<compile_context>
chip_gen: v5e
topology: v5e:2x2
jax: 0.10.0
libtpu: 0.0.40
codegen_flags: <defaults>
</compile_context>

<pallas_src>
import jax
import jax.numpy as jnp
from jax.experimental import pallas as pl
from jax.experimental.pallas import tpu as pltpu

# ---- ActorGCNN hyper-parameters (defaults from the PyTorch module) ----
FEAT_DIM = 3            # feature_dim_node
HIDDEN = 12             # hidden_channels
OUT_CH = 24             # out_channels
FC = 128                # fc_hidden_dim
NUM_LAYERS = 4          # -> conv1, 2 hidden convs, conv2
N_ACTIONS = 4
NODES_PER_GRAPH = 8     # num_nodes
NUM_GRAPHS = 2
N_TOTAL = NODES_PER_GRAPH * NUM_GRAPHS


# ----------------------------------------------------------------------------
# Fused Pallas kernel: whole forward pass in one invocation
# ----------------------------------------------------------------------------
def actor_gcnn_kernel(x_ref, adj_ref, pool_ref,
                      w1_ref, b1_ref,
                      wh1_ref, bh1_ref,
                      wh2_ref, bh2_ref,
                      w2_ref, b2_ref,
                      aw1_ref, ab1_ref, aw2_ref, ab2_ref,
                      x_out_ref, pooled_ref, pa_ref):
    f32 = jnp.float32
    adj = adj_ref[...]                      # (N, N) normalized dense adjacency
    x = x_ref[...]                          # (N, FEAT_DIM)

    def gcn(h, w_ref, b_ref, relu):
        # GCNConv: propagate(A_hat, x @ W) + bias
        h = jnp.dot(h, w_ref[...], preferred_element_type=f32)
        h = jnp.dot(adj, h, preferred_element_type=f32) + b_ref[...]
        return jnp.maximum(h, 0.0) if relu else h

    h = gcn(x, w1_ref, b1_ref, relu=True)       # conv1 + ReLU
    h = gcn(h, wh1_ref, bh1_ref, relu=True)     # hidden conv + ReLU
    h = gcn(h, wh2_ref, bh2_ref, relu=True)     # hidden conv + ReLU
    xo = gcn(h, w2_ref, b2_ref, relu=False)     # conv2 (no ReLU)
    x_out_ref[...] = xo                         # (N, OUT_CH)

    # global_mean_pool as one matmul with the precomputed pooling matrix
    pooled = jnp.dot(pool_ref[...], xo, preferred_element_type=f32)  # (G, OUT_CH)
    pooled_ref[...] = pooled

    # actor MLP + softmax over actions
    a = jnp.maximum(
        jnp.dot(pooled, aw1_ref[...], preferred_element_type=f32) + ab1_ref[...],
        0.0)
    logits = jnp.dot(a, aw2_ref[...], preferred_element_type=f32) + ab2_ref[...]
    logits = logits - jnp.max(logits, axis=-1, keepdims=True)
    p = jnp.exp(logits)
    pa_ref[...] = p / jnp.sum(p, axis=-1, keepdims=True)             # (G, A)


def actor_gcnn_forward(params, x, adj_norm, pool_mat):
    """Single fused pallas_call. Returns (x, pooled_x, pa) like ActorGNNOutput."""
    n = x.shape[0]
    g = pool_mat.shape[0]
    vmem = pl.BlockSpec(memory_space=pltpu.MemorySpace.VMEM)

    flat_params = [
        params["w1"], params["b1"],
        params["wh1"], params["bh1"],
        params["wh2"], params["bh2"],
        params["w2"], params["b2"],
        params["aw1"], params["ab1"], params["aw2"], params["ab2"],
    ]
    out_shape = (
        jax.ShapeDtypeStruct((n, OUT_CH), jnp.float32),      # node embeddings x
        jax.ShapeDtypeStruct((g, OUT_CH), jnp.float32),      # pooled_x
        jax.ShapeDtypeStruct((g, N_ACTIONS), jnp.float32),   # pa (softmaxed)
    )
    return pl.pallas_call(
        actor_gcnn_kernel,
        out_shape=out_shape,
        in_specs=[vmem] * (3 + len(flat_params)),
        out_specs=(vmem, vmem, vmem),
    )(x, adj_norm, pool_mat, *flat_params)


# ----------------------------------------------------------------------------
# Static (graph-dependent) precomputation — done once outside the jit
# ----------------------------------------------------------------------------
def gcn_norm_dense(edge_index, n):
    """Dense A_hat = D^-1/2 (A + I) D^-1/2 matching PyG gcn_norm defaults."""
    src, dst = edge_index[0], edge_index[1]
    adj = jnp.zeros((n, n), jnp.float32).at[dst, src].add(1.0)
    adj = adj + jnp.eye(n, dtype=jnp.float32)            # add self loops
    deg = jnp.sum(adj, axis=1)                           # in-degree incl. self
    dinv = jnp.where(deg > 0, 1.0 / jnp.sqrt(deg), 0.0)
    return (dinv[:, None] * adj) * dinv[None, :]


def mean_pool_matrix(nodes_per_graph, total_nodes):
    """Dense (num_graphs, total_nodes) matrix implementing global_mean_pool."""
    if total_nodes % nodes_per_graph != 0:
        raise ValueError("Total number of nodes is not a multiple of nodes per graph.")
    num_graphs = total_nodes // nodes_per_graph
    batch = jnp.repeat(jnp.arange(num_graphs), nodes_per_graph)      # (N,)
    onehot = (batch[None, :] == jnp.arange(num_graphs)[:, None]).astype(jnp.float32)
    return onehot / float(nodes_per_graph)


# ----------------------------------------------------------------------------
# Parameter init (deterministic, synthetic)
# ----------------------------------------------------------------------------
def init_params(key):
    ks = jax.random.split(key, 12)

    def dense(k, shape, scale=0.1):
        return (scale * jax.random.normal(k, shape)).astype(jnp.float32)

    return {
        "w1":  dense(ks[0], (FEAT_DIM, HIDDEN)),  "b1":  dense(ks[1], (1, HIDDEN)),
        "wh1": dense(ks[2], (HIDDEN, HIDDEN)),    "bh1": dense(ks[3], (1, HIDDEN)),
        "wh2": dense(ks[4], (HIDDEN, HIDDEN)),    "bh2": dense(ks[5], (1, HIDDEN)),
        "w2":  dense(ks[6], (HIDDEN, OUT_CH)),    "b2":  dense(ks[7], (1, OUT_CH)),
        "aw1": dense(ks[8], (OUT_CH, FC)),        "ab1": dense(ks[9], (1, FC)),
        "aw2": dense(ks[10], (FC, N_ACTIONS)),    "ab2": dense(ks[11], (1, N_ACTIONS)),
    }


# ----------------------------------------------------------------------------
if __name__ == "__main__":
    root = jax.random.PRNGKey(0)
    k_param, k_x = jax.random.split(root)

    params = init_params(k_param)

    # two disjoint ring graphs of NODES_PER_GRAPH nodes each (both directions)
    edges_src, edges_dst = [], []
    for g in range(NUM_GRAPHS):
        base = g * NODES_PER_GRAPH
        idx = jnp.arange(NODES_PER_GRAPH)
        edges_src.append(base + idx)
        edges_dst.append(base + (idx + 1) % NODES_PER_GRAPH)
        edges_src.append(base + idx)
        edges_dst.append(base + (idx - 1) % NODES_PER_GRAPH)
    edge_index = jnp.stack([jnp.concatenate(edges_src),
                            jnp.concatenate(edges_dst)]).astype(jnp.int32)

    # static precompute: normalized adjacency + mean-pool matrix (review item)
    adj_norm = gcn_norm_dense(edge_index, N_TOTAL)                  # (N, N)
    pool_mat = mean_pool_matrix(NODES_PER_GRAPH, N_TOTAL)           # (G, N)

    x = jax.random.normal(k_x, (N_TOTAL, FEAT_DIM), jnp.float32)    # node features

    fwd = jax.jit(actor_gcnn_forward)
    x_out, pooled_x, pa = fwd(params, x, adj_norm, pool_mat)
    jax.block_until_ready((x_out, pooled_x, pa))

    assert x_out.shape == (N_TOTAL, OUT_CH)
    assert pooled_x.shape == (NUM_GRAPHS, OUT_CH)
    assert pa.shape == (NUM_GRAPHS, N_ACTIONS)
    # pa rows are valid probability distributions
    assert bool(jnp.all(jnp.abs(jnp.sum(pa, axis=-1) - 1.0) < 1e-5))
    print("KERNEL_OK")
</pallas_src>

<mosaic_0001>
module attributes {stable_mosaic.version = 11 : i64} {
  func.func @actor_gcnn_kernel(%arg0: memref<16x3xf32, #tpu.memory_space<vmem>>, %arg1: memref<16x16xf32, #tpu.memory_space<vmem>>, %arg2: memref<2x16xf32, #tpu.memory_space<vmem>>, %arg3: memref<3x12xf32, #tpu.memory_space<vmem>>, %arg4: memref<1x12xf32, #tpu.memory_space<vmem>>, %arg5: memref<12x12xf32, #tpu.memory_space<vmem>>, %arg6: memref<1x12xf32, #tpu.memory_space<vmem>>, %arg7: memref<12x12xf32, #tpu.memory_space<vmem>>, %arg8: memref<1x12xf32, #tpu.memory_space<vmem>>, %arg9: memref<12x24xf32, #tpu.memory_space<vmem>>, %arg10: memref<1x24xf32, #tpu.memory_space<vmem>>, %arg11: memref<24x128xf32, #tpu.memory_space<vmem>>, %arg12: memref<1x128xf32, #tpu.memory_space<vmem>>, %arg13: memref<128x4xf32, #tpu.memory_space<vmem>>, %arg14: memref<1x4xf32, #tpu.memory_space<vmem>>, %arg15: memref<16x24xf32, #tpu.memory_space<vmem>>, %arg16: memref<2x24xf32, #tpu.memory_space<vmem>>, %arg17: memref<2x4xf32, #tpu.memory_space<vmem>>) attributes {dimension_semantics = [], scalar_prefetch = 0 : i64, scratch_operands = 0 : i64, tpu.core_type = #tpu.core_type<tc>} {
    %c0 = arith.constant 0 : index
    %c0_0 = arith.constant 0 : index
    %0 = vector.load %arg1[%c0, %c0_0] : memref<16x16xf32, #tpu.memory_space<vmem>>, vector<16x16xf32>
    %c0_1 = arith.constant 0 : index
    %c0_2 = arith.constant 0 : index
    %1 = vector.load %arg0[%c0_1, %c0_2] : memref<16x3xf32, #tpu.memory_space<vmem>>, vector<16x3xf32>
    %c0_3 = arith.constant 0 : index
    %c0_4 = arith.constant 0 : index
    %2 = vector.load %arg3[%c0_3, %c0_4] : memref<3x12xf32, #tpu.memory_space<vmem>>, vector<3x12xf32>
    %cst = arith.constant dense<0.000000e+00> : vector<16x12xf32>
    %3 = tpu.matmul %1, %2, %cst {dimension_numbers = #tpu.dot_dimension_numbers<[1], [0], [0], [1], [0, 0, 1, 1], [], []>} : vector<16x3xf32>, vector<3x12xf32>, vector<16x12xf32> -> vector<16x12xf32>
    %cst_5 = arith.constant dense<0.000000e+00> : vector<16x12xf32>
    %4 = tpu.matmul %0, %3, %cst_5 {dimension_numbers = #tpu.dot_dimension_numbers<[1], [0], [0], [1], [0, 0, 1, 1], [], []>} : vector<16x16xf32>, vector<16x12xf32>, vector<16x12xf32> -> vector<16x12xf32>
    %c0_6 = arith.constant 0 : index
    %c0_7 = arith.constant 0 : index
    %5 = vector.load %arg4[%c0_6, %c0_7] : memref<1x12xf32, #tpu.memory_space<vmem>>, vector<1x12xf32>
    %6 = vector.broadcast %5 : vector<1x12xf32> to vector<16x12xf32>
    %7 = arith.addf %4, %6 : vector<16x12xf32>
    %cst_8 = arith.constant 0.000000e+00 : f32
    %8 = vector.broadcast %cst_8 : f32 to vector<16x12xf32>
    %9 = arith.maximumf %7, %8 : vector<16x12xf32>
    %c0_9 = arith.constant 0 : index
    %c0_10 = arith.constant 0 : index
    %10 = vector.load %arg5[%c0_9, %c0_10] : memref<12x12xf32, #tpu.memory_space<vmem>>, vector<12x12xf32>
    %cst_11 = arith.constant dense<0.000000e+00> : vector<16x12xf32>
    %11 = tpu.matmul %9, %10, %cst_11 {dimension_numbers = #tpu.dot_dimension_numbers<[1], [0], [0], [1], [0, 0, 1, 1], [], []>} : vector<16x12xf32>, vector<12x12xf32>, vector<16x12xf32> -> vector<16x12xf32>
    %cst_12 = arith.constant dense<0.000000e+00> : vector<16x12xf32>
    %12 = tpu.matmul %0, %11, %cst_12 {dimension_numbers = #tpu.dot_dimension_numbers<[1], [0], [0], [1], [0, 0, 1, 1], [], []>} : vector<16x16xf32>, vector<16x12xf32>, vector<16x12xf32> -> vector<16x12xf32>
    %c0_13 = arith.constant 0 : index
    %c0_14 = arith.constant 0 : index
    %13 = vector.load %arg6[%c0_13, %c0_14] : memref<1x12xf32, #tpu.memory_space<vmem>>, vector<1x12xf32>
    %14 = vector.broadcast %13 : vector<1x12xf32> to vector<16x12xf32>
    %15 = arith.addf %12, %14 : vector<16x12xf32>
    %cst_15 = arith.constant 0.000000e+00 : f32
    %16 = vector.broadcast %cst_15 : f32 to vector<16x12xf32>
    %17 = arith.maximumf %15, %16 : vector<16x12xf32>
    %c0_16 = arith.constant 0 : index
    %c0_17 = arith.constant 0 : index
    %18 = vector.load %arg7[%c0_16, %c0_17] : memref<12x12xf32, #tpu.memory_space<vmem>>, vector<12x12xf32>
    %cst_18 = arith.constant dense<0.000000e+00> : vector<16x12xf32>
    %19 = tpu.matmul %17, %18, %cst_18 {dimension_numbers = #tpu.dot_dimension_numbers<[1], [0], [0], [1], [0, 0, 1, 1], [], []>} : vector<16x12xf32>, vector<12x12xf32>, vector<16x12xf32> -> vector<16x12xf32>
    %cst_19 = arith.constant dense<0.000000e+00> : vector<16x12xf32>
    %20 = tpu.matmul %0, %19, %cst_19 {dimension_numbers = #tpu.dot_dimension_numbers<[1], [0], [0], [1], [0, 0, 1, 1], [], []>} : vector<16x16xf32>, vector<16x12xf32>, vector<16x12xf32> -> vector<16x12xf32>
    %c0_20 = arith.constant 0 : index
    %c0_21 = arith.constant 0 : index
    %21 = vector.load %arg8[%c0_20, %c0_21] : memref<1x12xf32, #tpu.memory_space<vmem>>, vector<1x12xf32>
    %22 = vector.broadcast %21 : vector<1x12xf32> to vector<16x12xf32>
    %23 = arith.addf %20, %22 : vector<16x12xf32>
    %cst_22 = arith.constant 0.000000e+00 : f32
    %24 = vector.broadcast %cst_22 : f32 to vector<16x12xf32>
    %25 = arith.maximumf %23, %24 : vector<16x12xf32>
    %c0_23 = arith.constant 0 : index
    %c0_24 = arith.constant 0 : index
    %26 = vector.load %arg9[%c0_23, %c0_24] : memref<12x24xf32, #tpu.memory_space<vmem>>, vector<12x24xf32>
    %cst_25 = arith.constant dense<0.000000e+00> : vector<16x24xf32>
    %27 = tpu.matmul %25, %26, %cst_25 {dimension_numbers = #tpu.dot_dimension_numbers<[1], [0], [0], [1], [0, 0, 1, 1], [], []>} : vector<16x12xf32>, vector<12x24xf32>, vector<16x24xf32> -> vector<16x24xf32>
    %cst_26 = arith.constant dense<0.000000e+00> : vector<16x24xf32>
    %28 = tpu.matmul %0, %27, %cst_26 {dimension_numbers = #tpu.dot_dimension_numbers<[1], [0], [0], [1], [0, 0, 1, 1], [], []>} : vector<16x16xf32>, vector<16x24xf32>, vector<16x24xf32> -> vector<16x24xf32>
    %c0_27 = arith.constant 0 : index
    %c0_28 = arith.constant 0 : index
    %29 = vector.load %arg10[%c0_27, %c0_28] : memref<1x24xf32, #tpu.memory_space<vmem>>, vector<1x24xf32>
    %30 = vector.broadcast %29 : vector<1x24xf32> to vector<16x24xf32>
    %31 = arith.addf %28, %30 : vector<16x24xf32>
    %c0_29 = arith.constant 0 : index
    %c0_30 = arith.constant 0 : index
    %32 = vector.load %arg15[%c0_29, %c0_30] : memref<16x24xf32, #tpu.memory_space<vmem>>, vector<16x24xf32>
    tpu.vector_store %arg15[%c0_29, %c0_30], %31 {strides = array<i32>} : memref<16x24xf32, #tpu.memory_space<vmem>>, vector<16x24xf32>,
    %c0_31 = arith.constant 0 : index
    %c0_32 = arith.constant 0 : index
    %33 = vector.load %arg2[%c0_31, %c0_32] : memref<2x16xf32, #tpu.memory_space<vmem>>, vector<2x16xf32>
    %cst_33 = arith.constant dense<0.000000e+00> : vector<2x24xf32>
    %34 = tpu.matmul %33, %31, %cst_33 {dimension_numbers = #tpu.dot_dimension_numbers<[1], [0], [0], [1], [0, 0, 1, 1], [], []>} : vector<2x16xf32>, vector<16x24xf32>, vector<2x24xf32> -> vector<2x24xf32>
    %c0_34 = arith.constant 0 : index
    %c0_35 = arith.constant 0 : index
    %35 = vector.load %arg16[%c0_34, %c0_35] : memref<2x24xf32, #tpu.memory_space<vmem>>, vector<2x24xf32>
    tpu.vector_store %arg16[%c0_34, %c0_35], %34 {strides = array<i32>} : memref<2x24xf32, #tpu.memory_space<vmem>>, vector<2x24xf32>,
    %c0_36 = arith.constant 0 : index
    %c0_37 = arith.constant 0 : index
    %36 = vector.load %arg11[%c0_36, %c0_37] : memref<24x128xf32, #tpu.memory_space<vmem>>, vector<24x128xf32>
    %cst_38 = arith.constant dense<0.000000e+00> : vector<2x128xf32>
    %37 = tpu.matmul %34, %36, %cst_38 {dimension_numbers = #tpu.dot_dimension_numbers<[1], [0], [0], [1], [0, 0, 1, 1], [], []>} : vector<2x24xf32>, vector<24x128xf32>, vector<2x128xf32> -> vector<2x128xf32>
    %c0_39 = arith.constant 0 : index
    %c0_40 = arith.constant 0 : index
    %38 = vector.load %arg12[%c0_39, %c0_40] : memref<1x128xf32, #tpu.memory_space<vmem>>, vector<1x128xf32>
    %39 = vector.broadcast %38 : vector<1x128xf32> to vector<2x128xf32>
    %40 = arith.addf %37, %39 : vector<2x128xf32>
    %cst_41 = arith.constant 0.000000e+00 : f32
    %41 = vector.broadcast %cst_41 : f32 to vector<2x128xf32>
    %42 = arith.maximumf %40, %41 : vector<2x128xf32>
    %c0_42 = arith.constant 0 : index
    %c0_43 = arith.constant 0 : index
    %43 = vector.load %arg13[%c0_42, %c0_43] : memref<128x4xf32, #tpu.memory_space<vmem>>, vector<128x4xf32>
    %cst_44 = arith.constant dense<0.000000e+00> : vector<2x4xf32>
    %44 = tpu.matmul %42, %43, %cst_44 {dimension_numbers = #tpu.dot_dimension_numbers<[1], [0], [0], [1], [0, 0, 1, 1], [], []>} : vector<2x128xf32>, vector<128x4xf32>, vector<2x4xf32> -> vector<2x4xf32>
    %c0_45 = arith.constant 0 : index
    %c0_46 = arith.constant 0 : index
    %45 = vector.load %arg14[%c0_45, %c0_46] : memref<1x4xf32, #tpu.memory_space<vmem>>, vector<1x4xf32>
    %46 = vector.broadcast %45 : vector<1x4xf32> to vector<2x4xf32>
    %47 = arith.addf %44, %46 : vector<2x4xf32>
    %cst_47 = arith.constant dense<0xFF800000> : vector<2xf32>
    %48 = vector.multi_reduction <maximumf>, %47, %cst_47 [1] : vector<2x4xf32> to vector<2xf32>
    %49 = vector.shape_cast %48 : vector<2xf32> to vector<2x1xf32>
    %50 = vector.broadcast %49 : vector<2x1xf32> to vector<2x4xf32>
    %51 = arith.subf %47, %50 : vector<2x4xf32>
    %52 = math.exp %51 : vector<2x4xf32>
    %cst_48 = arith.constant dense<0.000000e+00> : vector<2xf32>
    %53 = vector.multi_reduction <add>, %52, %cst_48 [1] : vector<2x4xf32> to vector<2xf32>
    %54 = vector.shape_cast %53 : vector<2xf32> to vector<2x1xf32>
    %55 = vector.broadcast %54 : vector<2x1xf32> to vector<2x4xf32>
    %56 = arith.divf %52, %55 : vector<2x4xf32>
    %c0_49 = arith.constant 0 : index
    %c0_50 = arith.constant 0 : index
    %57 = vector.load %arg17[%c0_49, %c0_50] : memref<2x4xf32, #tpu.memory_space<vmem>>, vector<2x4xf32>
    tpu.vector_store %arg17[%c0_49, %c0_50], %56 {strides = array<i32>} : memref<2x4xf32, #tpu.memory_space<vmem>>, vector<2x4xf32>,
    return
  }
}

</mosaic_0001>

<llo_original>
// kernel: actor_gcnn_forward.1
$region0: #{actor_gcnn_forward.1}
  #allocation0 [shape = 'u32[]', space=smem, size = 0x4, offset = 0x4, fixed_abs, tag = 'smem constant byte address 0x4 - core index']
  #allocation1 [shape = 'u32[72,128]{1,0:T(1,128)}', space=vmem, size = 0x9000, scoped, tag = 'internal scratch']
  %s0 = inlined_call_operand.vmem [shape: f32[16,3], index: 0, kind: input, shape index: {}]
  %s1 = inlined_call_operand.vmem [shape: f32[16,16], index: 1, kind: input, shape index: {}]
  %s2 = inlined_call_operand.vmem [shape: f32[2,16], index: 2, kind: input, shape index: {}]
  %s3 = inlined_call_operand.vmem [shape: f32[3,12], index: 3, kind: input, shape index: {}]
  %s4 = inlined_call_operand.vmem [shape: f32[1,12], index: 4, kind: input, shape index: {}]
  %s5 = inlined_call_operand.vmem [shape: f32[12,12], index: 5, kind: input, shape index: {}]
  %s6 = inlined_call_operand.vmem [shape: f32[1,12], index: 6, kind: input, shape index: {}]
  %s7 = inlined_call_operand.vmem [shape: f32[12,12], index: 7, kind: input, shape index: {}]
  %s8 = inlined_call_operand.vmem [shape: f32[1,12], index: 8, kind: input, shape index: {}]
  %s9 = inlined_call_operand.vmem [shape: f32[12,24], index: 9, kind: input, shape index: {}]
  %s10 = inlined_call_operand.vmem [shape: f32[1,24], index: 10, kind: input, shape index: {}]
  %s11 = inlined_call_operand.vmem [shape: f32[24,128], index: 11, kind: input, shape index: {}]
  %s12 = inlined_call_operand.vmem [shape: f32[1,128], index: 12, kind: input, shape index: {}]
  %s13 = inlined_call_operand.vmem [shape: f32[128,4], index: 13, kind: input, shape index: {}]
  %s14 = inlined_call_operand.vmem [shape: f32[1,4], index: 14, kind: input, shape index: {}]
  %s15 = inlined_call_operand.hbm [shape: f32[16,24], index: 15, kind: output, shape index: {0}]
  %s16 = inlined_call_operand.hbm [shape: f32[2,24], index: 16, kind: output, shape index: {1}]
  %s17 = inlined_call_operand.hbm [shape: f32[2,4], index: 17, kind: output, shape index: {2}]
  %18 = xla_tuple %s15, %s16, %s17
  %s19 = sld [smem:[#allocation0]]
  $region86: #{actor_gcnn_forward.1} parent=0
    _
  %s21 = ssub.s32 1, %s19
  %s22 = scalar_select 0, %s21, %s19
  $region1: #{actor_gcnn_forward.1} parent=0
    #allocation2 [shape = 'u8[8192]{0}', space=vmem, size = 0x2000, scoped, tag = 'output window, operand 0, single buffered']
    #allocation3 [shape = 's32[1]{0}', space=sflag, size = 0x4, scoped, tag = 'scoped memory for actor_gcnn_forward.1']
    #allocation4 [shape = 'u8[1024]{0}', space=vmem, size = 0x400, scoped, tag = 'output window, operand 1, single buffered']
    #allocation5 [shape = 's32[1]{0}', space=sflag, size = 0x4, scoped, tag = 'scoped memory for actor_gcnn_forward.1']
    #allocation6 [shape = 'u8[1024]{0}', space=vmem, size = 0x400, scoped, tag = 'output window, operand 2, single buffered']
    %23 = vsyncpa [#allocation3], 0
    %24 = vsyncpa [#allocation5], 0
    // Predicated region
    $region2: #{actor_gcnn_forward.1} parent=1 // pred_check
      _
    $region3: #{actor_gcnn_forward.1} parent=1 // pred_check_branch
      %26 = sbr.rel (0) target = $region5
    $region4: #{actor_gcnn_forward.1} parent=1 // pred_region
      _
    $region5: #{actor_gcnn_forward.1} parent=1 // pred_fallthru
      _
    // Predicated region
    $region6: #{actor_gcnn_forward.1} parent=1 // pred_check
      _
    $region7: #{actor_gcnn_forward.1} parent=1 // pred_check_branch
      %28 = sbr.rel (0) target = $region9
    $region8: #{actor_gcnn_forward.1} parent=1 // pred_region
      _
    $region9: #{actor_gcnn_forward.1} parent=1 // pred_fallthru
      _
    // Predicated region
    $region10: #{actor_gcnn_forward.1} parent=1 // pred_check
      _
    $region11: #{actor_gcnn_forward.1} parent=1 // pred_check_branch
      %30 = sbr.rel (0) target = $region13
    $region12: #{actor_gcnn_forward.1} parent=1 // pred_region
      _
    $region13: #{actor_gcnn_forward.1} parent=1 // pred_fallthru
      _
    // Predicated region
    $region14: #{actor_gcnn_forward.1} parent=1 // pred_check
      _
    $region15: #{actor_gcnn_forward.1} parent=1 // pred_check_branch
      %32 = sbr.rel (0) target = $region17
    $region16: #{actor_gcnn_forward.1} parent=1 // pred_region
      _
    $region17: #{actor_gcnn_forward.1} parent=1 // pred_fallthru
      _
    // Predicated region
    $region18: #{actor_gcnn_forward.1} parent=1 // pred_check
      _
    $region19: #{actor_gcnn_forward.1} parent=1 // pred_check_branch
      %34 = sbr.rel (0) target = $region21
    $region20: #{actor_gcnn_forward.1} parent=1 // pred_region
      _
    $region21: #{actor_gcnn_forward.1} parent=1 // pred_fallthru
      _
    // Predicated region
    $region22: #{actor_gcnn_forward.1} parent=1 // pred_check
      _
    $region23: #{actor_gcnn_forward.1} parent=1 // pred_check_branch
      %36 = sbr.rel (0) target = $region25
    $region24: #{actor_gcnn_forward.1} parent=1 // pred_region
      _
    $region25: #{actor_gcnn_forward.1} parent=1 // pred_fallthru
      _
    // Predicated region
    $region26: #{actor_gcnn_forward.1} parent=1 // pred_check
      _
    $region27: #{actor_gcnn_forward.1} parent=1 // pred_check_branch
      %38 = sbr.rel (0) target = $region29
    $region28: #{actor_gcnn_forward.1} parent=1 // pred_region
      _
    $region29: #{actor_gcnn_forward.1} parent=1 // pred_fallthru
      _
    // Predicated region
    $region30: #{actor_gcnn_forward.1} parent=1 // pred_check
      _
    $region31: #{actor_gcnn_forward.1} parent=1 // pred_check_branch
      %40 = sbr.rel (0) target = $region33
    $region32: #{actor_gcnn_forward.1} parent=1 // pred_region
      _
    $region33: #{actor_gcnn_forward.1} parent=1 // pred_fallthru
      _
    // Predicated region
    $region34: #{actor_gcnn_forward.1} parent=1 // pred_check
      _
    $region35: #{actor_gcnn_forward.1} parent=1 // pred_check_branch
      %42 = sbr.rel (0) target = $region37
    $region36: #{actor_gcnn_forward.1} parent=1 // pred_region
      _
    $region37: #{actor_gcnn_forward.1} parent=1 // pred_fallthru
      _
    // Predicated region
    $region38: #{actor_gcnn_forward.1} parent=1 // pred_check
      _
    $region39: #{actor_gcnn_forward.1} parent=1 // pred_check_branch
      %44 = sbr.rel (0) target = $region41
    $region40: #{actor_gcnn_forward.1} parent=1 // pred_region
      _
    $region41: #{actor_gcnn_forward.1} parent=1 // pred_fallthru
      _
    // Predicated region
    $region42: #{actor_gcnn_forward.1} parent=1 // pred_check
      _
    $region43: #{actor_gcnn_forward.1} parent=1 // pred_check_branch
      %46 = sbr.rel (0) target = $region45
    $region44: #{actor_gcnn_forward.1} parent=1 // pred_region
      _
    $region45: #{actor_gcnn_forward.1} parent=1 // pred_fallthru
      _
    // Predicated region
    $region46: #{actor_gcnn_forward.1} parent=1 // pred_check
      _
    $region47: #{actor_gcnn_forward.1} parent=1 // pred_check_branch
      %48 = sbr.rel (0) target = $region49
    $region48: #{actor_gcnn_forward.1} parent=1 // pred_region
      _
    $region49: #{actor_gcnn_forward.1} parent=1 // pred_fallthru
      _
    // Predicated region
    $region50: #{actor_gcnn_forward.1} parent=1 // pred_check
      _
    $region51: #{actor_gcnn_forward.1} parent=1 // pred_check_branch
      %50 = sbr.rel (0) target = $region53
    $region52: #{actor_gcnn_forward.1} parent=1 // pred_region
      _
    $region53: #{actor_gcnn_forward.1} parent=1 // pred_fallthru
      _
    // Predicated region
    $region54: #{actor_gcnn_forward.1} parent=1 // pred_check
      _
    $region55: #{actor_gcnn_forward.1} parent=1 // pred_check_branch
      %52 = sbr.rel (0) target = $region57
    $region56: #{actor_gcnn_forward.1} parent=1 // pred_region
      _
    $region57: #{actor_gcnn_forward.1} parent=1 // pred_fallthru
      _
    // Predicated region
    $region58: #{actor_gcnn_forward.1} parent=1 // pred_check
      _
    $region59: #{actor_gcnn_forward.1} parent=1 // pred_check_branch
      %54 = sbr.rel (0) target = $region61
    $region60: #{actor_gcnn_forward.1} parent=1 // pred_region
      _
    $region61: #{actor_gcnn_forward.1} parent=1 // pred_fallthru
      _
    %v55 = vld [vmem:[%s1] sm:$0xff]
    %v56 = vld [vmem:[%s1 + $0x8] sm:$0xff]
    %v57 = vld [vmem:[%s0] sm:$0xff]
    %v58 = vld [vmem:[%s0 + $0x8] sm:$0xff]
    %v59 = vld [vmem:[%s3] sm:$0x7]
    %vm60 = vcmask 23552
    %v62 = vsel %vm60, %v57, 0
    %v65 = vsel %vm60, %v58, 0
    %vm67 = vcmask 1042432
    %v69 = vsel %vm67, %v59, 0
    %71 = vmatpush.msra.mxu0 0.0
    %72 = vmatpush.msra.mxu0 0.0
    %73 = vmatpush.msra.mxu0 0.0
    %74 = vmatpush.msra.mxu0 0.0
    %75 = vmatpush.msra.mxu0 0.0
    %76 = vmatpush.msra.mxu0 0.0
    %77 = vmatpush.msra.mxu0 0.0
    %78 = vmatpush.msra.mxu0 0.0
    %79 = vmatpush.msra.mxu0 0.0
    %80 = vmatpush.msra.mxu0 0.0
    %81 = vmatpush.msra.mxu0 0.0
    %82 = vmatpush.msra.mxu0 0.0
    %83 = vmatpush.msra.mxu0 0.0
    %84 = vmatpush.msra.mxu0 0.0
    %85 = vmatpush.msra.mxu0 0.0
    %86 = vmatpush.msra.mxu0 %v69
    %87 = vmatmul.f32.gmra.mxu0 %v62
    %v88 = vpop.f32.mrf.mxu0
    %v89 = vadd.f32 0.0, %v88
    %90 = vmatmul.f32.gmra.mxu0 %v65
    %v91 = vpop.f32.mrf.mxu0
    %v92 = vadd.f32 0.0, %v91
    %93 = vdwg.mxu0
    %v94 = vld [vmem:[%s4] sm:$0x1]
    %v96 = vperm.slane %v94, 0
    %vm98 = vcmask 130048
    %v100 = vsel %vm98, %v55, 0
    %v103 = vsel %vm98, %v56, 0
    %105 = vmatpush.msra.mxu0 0.0
    %106 = vmatpush.msra.mxu0 0.0
    %107 = vmatpush.msra.mxu0 0.0
    %108 = vmatpush.msra.mxu0 0.0
    %109 = vmatpush.msra.mxu0 0.0
    %110 = vmatpush.msra.mxu0 0.0
    %111 = vmatpush.msra.mxu0 0.0
    %112 = vmatpush.msra.mxu0 0.0
    %113 = vmatpush.msra.mxu0 0.0
    %114 = vmatpush.msra.mxu0 0.0
    %115 = vmatpush.msra.mxu0 0.0
    %116 = vmatpush.msra.mxu0 0.0
    %117 = vmatpush.msra.mxu0 0.0
    %118 = vmatpush.msra.mxu0 0.0
    %119 = vmatpush.msra.mxu0 %v92
    %120 = vmatpush.msra.mxu0 %v89
    %121 = vmatmul.f32.gmra.mxu0 %v100
    %v122 = vpop.f32.mrf.mxu0
    %v123 = vadd.f32 %v96, %v122
    %124 = vmatmul.f32.gmra.mxu0 %v103
    %v125 = vpop.f32.mrf.mxu0
    %v126 = vadd.f32 %v96, %v125
    %127 = vdwg.mxu0
    %v128 = vmax.f32 %v123, 0.0
    %v129 = vmax.f32 %v126, 0.0
    %v130 = vld [vmem:[%s5] sm:$0xff]
    %v131 = vld [vmem:[%s5 + $0x8] sm:$0xf]
    %vm132 = vcmask 97280
    %v134 = vsel %vm132, %v128, 0
    %v137 = vsel %vm132, %v129, 0
    %vm139 = vcmask 1043456
    %v141 = vsel %vm139, %v131, 0
    %143 = vmatpush.msra.mxu0 0.0
    %144 = vmatpush.msra.mxu0 0.0
    %145 = vmatpush.msra.mxu0 0.0
    %146 = vmatpush.msra.mxu0 0.0
    %147 = vmatpush.msra.mxu0 0.0
    %148 = vmatpush.msra.mxu0 0.0
    %149 = vmatpush.msra.mxu0 0.0
    %150 = vmatpush.msra.mxu0 0.0
    %151 = vmatpush.msra.mxu0 0.0
    %152 = vmatpush.msra.mxu0 0.0
    %153 = vmatpush.msra.mxu0 0.0
    %154 = vmatpush.msra.mxu0 0.0
    %155 = vmatpush.msra.mxu0 0.0
    %156 = vmatpush.msra.mxu0 0.0
    %157 = vmatpush.msra.mxu0 %v141
    %158 = vmatpush.msra.mxu0 %v130
    %159 = vmatmul.f32.gmra.mxu0 %v134
    %v160 = vpop.f32.mrf.mxu0
    %v161 = vadd.f32 0.0, %v160
    %162 = vmatmul.f32.gmra.mxu0 %v137
    %v163 = vpop.f32.mrf.mxu0
    %v164 = vadd.f32 0.0, %v163
    %165 = vdwg.mxu0
    %v166 = vld [vmem:[%s6] sm:$0x1]
    %v168 = vperm.slane %v166, 0
    %170 = vmatpush.msra.mxu0 0.0
    %171 = vmatpush.msra.mxu0 0.0
    %172 = vmatpush.msra.mxu0 0.0
    %173 = vmatpush.msra.mxu0 0.0
    %174 = vmatpush.msra.mxu0 0.0
    %175 = vmatpush.msra.mxu0 0.0
    %176 = vmatpush.msra.mxu0 0.0
    %177 = vmatpush.msra.mxu0 0.0
    %178 = vmatpush.msra.mxu0 0.0
    %179 = vmatpush.msra.mxu0 0.0
    %180 = vmatpush.msra.mxu0 0.0
    %181 = vmatpush.msra.mxu0 0.0
    %182 = vmatpush.msra.mxu0 0.0
    %183 = vmatpush.msra.mxu0 0.0
    %184 = vmatpush.msra.mxu0 %v164
    %185 = vmatpush.msra.mxu0 %v161
    %186 = vmatmul.f32.gmra.mxu0 %v100
    %v187 = vpop.f32.mrf.mxu0
    %v188 = vadd.f32 %v168, %v187
    %189 = vmatmul.f32.gmra.mxu0 %v103
    %v190 = vpop.f32.mrf.mxu0
    %v191 = vadd.f32 %v168, %v190
    %192 = vdwg.mxu0
    %v193 = vmax.f32 %v188, 0.0
    %v194 = vmax.f32 %v191, 0.0
    %v195 = vld [vmem:[%s7] sm:$0xff]
    %v196 = vld [vmem:[%s7 + $0x8] sm:$0xf]
    %v198 = vsel %vm132, %v193, 0
    %v201 = vsel %vm132, %v194, 0
    %v204 = vsel %vm139, %v196, 0
    %206 = vmatpush.msra.mxu0 0.0
    %207 = vmatpush.msra.mxu0 0.0
    %208 = vmatpush.msra.mxu0 0.0
    %209 = vmatpush.msra.mxu0 0.0
    %210 = vmatpush.msra.mxu0 0.0
    %211 = vmatpush.msra.mxu0 0.0
    %212 = vmatpush.msra.mxu0 0.0
    %213 = vmatpush.msra.mxu0 0.0
    %214 = vmatpush.msra.mxu0 0.0
    %215 = vmatpush.msra.mxu0 0.0
    %216 = vmatpush.msra.mxu0 0.0
    %217 = vmatpush.msra.mxu0 0.0
    %218 = vmatpush.msra.mxu0 0.0
    %219 = vmatpush.msra.mxu0 0.0
    %220 = vmatpush.msra.mxu0 %v204
    %221 = vmatpush.msra.mxu0 %v195
    %222 = vmatmul.f32.gmra.mxu0 %v198
    %v223 = vpop.f32.mrf.mxu0
    %v224 = vadd.f32 0.0, %v223
    %225 = vmatmul.f32.gmra.mxu0 %v201
    %v226 = vpop.f32.mrf.mxu0
    %v227 = vadd.f32 0.0, %v226
    %228 = vdwg.mxu0
    %v229 = vld [vmem:[%s8] sm:$0x1]
    %v231 = vperm.slane %v229, 0
    %233 = vmatpush.msra.mxu0 0.0
    %234 = vmatpush.msra.mxu0 0.0
    %235 = vmatpush.msra.mxu0 0.0
    %236 = vmatpush.msra.mxu0 0.0
    %237 = vmatpush.msra.mxu0 0.0
    %238 = vmatpush.msra.mxu0 0.0
    %239 = vmatpush.msra.mxu0 0.0
    %240 = vmatpush.msra.mxu0 0.0
    %241 = vmatpush.msra.mxu0 0.0
    %242 = vmatpush.msra.mxu0 0.0
    %243 = vmatpush.msra.mxu0 0.0
    %244 = vmatpush.msra.mxu0 0.0
    %245 = vmatpush.msra.mxu0 0.0
    %246 = vmatpush.msra.mxu0 0.0
    %247 = vmatpush.msra.mxu0 %v227
    %248 = vmatpush.msra.mxu0 %v224
    %249 = vmatmul.f32.gmra.mxu0 %v100
    %v250 = vpop.f32.mrf.mxu0
    %v251 = vadd.f32 %v231, %v250
    %252 = vmatmul.f32.gmra.mxu0 %v103
    %v253 = vpop.f32.mrf.mxu0
    %v254 = vadd.f32 %v231, %v253
    %255 = vdwg.mxu0
    %v256 = vmax.f32 %v251, 0.0
    %v257 = vmax.f32 %v254, 0.0
    %v258 = vld [vmem:[%s9] sm:$0xff]
    %v259 = vld [vmem:[%s9 + $0x8] sm:$0xf]
    %v261 = vsel %vm132, %v256, 0
    %v264 = vsel %vm132, %v257, 0
    %v267 = vsel %vm139, %v259, 0
    %269 = vmatpush.msra.mxu0 0.0
    %270 = vmatpush.msra.mxu0 0.0
    %271 = vmatpush.msra.mxu0 0.0
    %272 = vmatpush.msra.mxu0 0.0
    %273 = vmatpush.msra.mxu0 0.0
    %274 = vmatpush.msra.mxu0 0.0
    %275 = vmatpush.msra.mxu0 0.0
    %276 = vmatpush.msra.mxu0 0.0
    %277 = vmatpush.msra.mxu0 0.0
    %278 = vmatpush.msra.mxu0 0.0
    %279 = vmatpush.msra.mxu0 0.0
    %280 = vmatpush.msra.mxu0 0.0
    %281 = vmatpush.msra.mxu0 0.0
    %282 = vmatpush.msra.mxu0 0.0
    %283 = vmatpush.msra.mxu0 %v267
    %284 = vmatpush.msra.mxu0 %v258
    %285 = vmatmul.f32.gmra.mxu0 %v261
    %v286 = vpop.f32.mrf.mxu0
    %v287 = vadd.f32 0.0, %v286
    %288 = vmatmul.f32.gmra.mxu0 %v264
    %v289 = vpop.f32.mrf.mxu0
    %v290 = vadd.f32 0.0, %v289
    %291 = vdwg.mxu0
    %v292 = vld [vmem:[%s10] sm:$0x1]
    %v294 = vperm.slane %v292, 0
    %296 = vmatpush.msra.mxu0 0.0
    %297 = vmatpush.msra.mxu0 0.0
    %298 = vmatpush.msra.mxu0 0.0
    %299 = vmatpush.msra.mxu0 0.0
    %300 = vmatpush.msra.mxu0 0.0
    %301 = vmatpush.msra.mxu0 0.0
    %302 = vmatpush.msra.mxu0 0.0
    %303 = vmatpush.msra.mxu0 0.0
    %304 = vmatpush.msra.mxu0 0.0
    %305 = vmatpush.msra.mxu0 0.0
    %306 = vmatpush.msra.mxu0 0.0
    %307 = vmatpush.msra.mxu0 0.0
    %308 = vmatpush.msra.mxu0 0.0
    %309 = vmatpush.msra.mxu0 0.0
    %310 = vmatpush.msra.mxu0 %v290
    %311 = vmatpush.msra.mxu0 %v287
    %312 = vmatmul.f32.gmra.mxu0 %v100
    %v313 = vpop.f32.mrf.mxu0
    %v314 = vadd.f32 %v294, %v313
    %315 = vmatmul.f32.gmra.mxu0 %v103
    %v316 = vpop.f32.mrf.mxu0
    %v317 = vadd.f32 %v294, %v316
    %318 = vdwg.mxu0
    %vm319 = vcmask 195584
    %320 = vst.msk [vmem:[#allocation2] sm:$0xff] %vm319, %v314
    %321 = vst.msk [vmem:[#allocation2 + $0x8] sm:$0xff] %vm319, %v317
    %v322 = vld [vmem:[%s2] sm:$0x3]
    %v324 = vsel %vm98, %v322, 0
    %326 = vmatpush.msra.mxu0 0.0
    %327 = vmatpush.msra.mxu0 0.0
    %328 = vmatpush.msra.mxu0 0.0
    %329 = vmatpush.msra.mxu0 0.0
    %330 = vmatpush.msra.mxu0 0.0
    %331 = vmatpush.msra.mxu0 0.0
    %332 = vmatpush.msra.mxu0 0.0
    %333 = vmatpush.msra.mxu0 0.0
    %334 = vmatpush.msra.mxu0 0.0
    %335 = vmatpush.msra.mxu0 0.0
    %336 = vmatpush.msra.mxu0 0.0
    %337 = vmatpush.msra.mxu0 0.0
    %338 = vmatpush.msra.mxu0 0.0
    %339 = vmatpush.msra.mxu0 0.0
    %340 = vmatpush.msra.mxu0 %v317
    %341 = vmatpush.msra.mxu0 %v314
    %342 = vmatmul.f32.gmra.mxu0 %v324
    %v343 = vpop.f32.mrf.mxu0
    %v344 = vadd.f32 0.0, %v343
    %345 = vdwg.mxu0
    %vm346 = vcmask 189440
    %347 = vst.msk [vmem:[#allocation4] sm:$0x3] %vm346, %v344
    %v348 = vld [vmem:[%s11] sm:$0xff]
    %v349 = vld [vmem:[%s11 + $0x8] sm:$0xff]
    %v350 = vld [vmem:[%s11 + $0x10] sm:$0xff]
    %v351 = vld [vmem:[%s12] sm:$0x1]
    %v353 = vperm.slane %v351, 0
    %v356 = vsel %vm319, %v344, 0
    %358 = vmatpush.msra.mxu0 0.0
    %359 = vmatpush.msra.mxu0 0.0
    %360 = vmatpush.msra.mxu0 0.0
    %361 = vmatpush.msra.mxu0 0.0
    %362 = vmatpush.msra.mxu0 0.0
    %363 = vmatpush.msra.mxu0 0.0
    %364 = vmatpush.msra.mxu0 0.0
    %365 = vmatpush.msra.mxu0 0.0
    %366 = vmatpush.msra.mxu0 0.0
    %367 = vmatpush.msra.mxu0 0.0
    %368 = vmatpush.msra.mxu0 0.0
    %369 = vmatpush.msra.mxu0 0.0
    %370 = vmatpush.msra.mxu0 0.0
    %371 = vmatpush.msra.mxu0 %v350
    %372 = vmatpush.msra.mxu0 %v349
    %373 = vmatpush.msra.mxu0 %v348
    %374 = vmatmul.f32.gmra.mxu0 %v356
    %v375 = vpop.f32.mrf.mxu0
    %v376 = vadd.f32 %v353, %v375
    %377 = vdwg.mxu0
    %v378 = vmax.f32 %v376, 0.0
    %v379 = vld [vmem:[%s13] sm:$0xff]
    %v380 = vld [vmem:[%s13 + $0x8] sm:$0xff]
    %v381 = vld [vmem:[%s13 + $0x10] sm:$0xff]
    %v382 = vld [vmem:[%s13 + $0x18] sm:$0xff]
    %v383 = vld [vmem:[%s13 + $0x20] sm:$0xff]
    %v384 = vld [vmem:[%s13 + $0x28] sm:$0xff]
    %v385 = vld [vmem:[%s13 + $0x30] sm:$0xff]
    %v386 = vld [vmem:[%s13 + $0x38] sm:$0xff]
    %v387 = vld [vmem:[%s13 + $0x40] sm:$0xff]
    %v388 = vld [vmem:[%s13 + $0x48] sm:$0xff]
    %v389 = vld [vmem:[%s13 + $0x50] sm:$0xff]
    %v390 = vld [vmem:[%s13 + $0x58] sm:$0xff]
    %v391 = vld [vmem:[%s13 + $0x60] sm:$0xff]
    %v392 = vld [vmem:[%s13 + $0x68] sm:$0xff]
    %v393 = vld [vmem:[%s13 + $0x70] sm:$0xff]
    %v394 = vld [vmem:[%s13 + $0x78] sm:$0xff]
    %v395 = vld [vmem:[%s14] sm:$0x1]
    %v397 = vperm.slane %v395, 0
    %399 = vmatpush.msra.mxu0 %v394
    %400 = vmatpush.msra.mxu0 %v393
    %401 = vmatpush.msra.mxu0 %v392
    %402 = vmatpush.msra.mxu0 %v391
    %403 = vmatpush.msra.mxu0 %v390
    %404 = vmatpush.msra.mxu0 %v389
    %405 = vmatpush.msra.mxu0 %v388
    %406 = vmatpush.msra.mxu0 %v387
    %407 = vmatpush.msra.mxu0 %v386
    %408 = vmatpush.msra.mxu0 %v385
    %409 = vmatpush.msra.mxu0 %v384
    %410 = vmatpush.msra.mxu0 %v383
    %411 = vmatpush.msra.mxu0 %v382
    %412 = vmatpush.msra.mxu0 %v381
    %413 = vmatpush.msra.mxu0 %v380
    %414 = vmatpush.msra.mxu0 %v379
    %415 = vmatmul.f32.gmra.mxu0 %v378
    %v416 = vpop.f32.mrf.mxu0
    %v417 = vadd.f32 %v397, %v416
    %418 = vdwg.mxu0
    %vm419 = vcmask 25600
    %v420 = vsel %vm419, %v417, -inf
    %421 = vmax.xlane.f32.xlu0 %v420
    %v422 = vpop.xlane.xlu0 %421
    %v423 = vsub.f32 %v417, %v422
    %v424 = vmul.f32 %v423, 1.442695
    %v425 = vpow.pop %v424
    %v426 = vsel %vm419, %v425, 0.0
    %427 = vadd.xlane.f32.xlu0 %v426
    %v428 = vpop.xlane.xlu0 %427
    %v429 = vrcp.pop %v428
    %v430 = vmul.f32 %v428, %v429
    %v431 = vsub.f32 1.0, %v430
    %v432 = vmul.f32 %v429, %v431
    %v433 = vadd.f32 %v429, %v432
    %vm434 = vweird.f32 %v428
    %vm435 = vweird.f32 %v429
    %vm436 = vmor %vm434, %vm435
    %v437 = vsel %vm436, %v429, %v433
    %v438 = vand.u32 2147483647, %v428
    %vm439 = vcmp.eq.f32.partialorder %v438, 8.507059e+37
    %v440 = vand.u32 %v428, 2147483648
    %v441 = vor.u32 1.1754944e-38, %v440
    %v442 = vsel %vm439, %v441, %v437
    %v443 = vmul.f32 %v425, %v442
    %444 = vst.msk [vmem:[#allocation6] sm:$0x3] %vm419, %v443
    // Predicated region
    $region62: #{actor_gcnn_forward.1} parent=1 // pred_check
      _
    $region63: #{actor_gcnn_forward.1} parent=1 // pred_check_branch
      %446 = sbr.rel (0) target = $region65
    $region64: #{actor_gcnn_forward.1} parent=1 // pred_region
      %448 = vsyncadd [#allocation3], 0
      %s449 = sshll.u32 [#allocation2], 4
      %s450 = int_to_ptr.vmem [resolvable:$true] %s449
      %s451 = sshll.u32 %s15, 4
      %s452 = int_to_ptr.hbm [resolvable:$true] %s451
      %457 = dma.vmem_to_hbm [thread:$0]  %s450, 256, %s452, [#allocation3], 128, 128, 8
    $region65: #{actor_gcnn_forward.1} parent=1 // pred_fallthru
      _
    // Predicated region
    $region66: #{actor_gcnn_forward.1} parent=1 // pred_check
      _
    $region67: #{actor_gcnn_forward.1} parent=1 // pred_check_branch
      %459 = sbr.rel (0) target = $region69
    $region68: #{actor_gcnn_forward.1} parent=1 // pred_region
      %461 = vsyncadd [#allocation5], 0
      %s463 = sshll.u32 [#allocation4], 4
      %s464 = int_to_ptr.vmem [resolvable:$true] %s463
      %s465 = sshll.u32 %s16, 4
      %s466 = int_to_ptr.hbm [resolvable:$true] %s465
      %468 = dma.vmem_to_hbm [thread:$0]  %s464, 32, %s466, [#allocation5]
    $region69: #{actor_gcnn_forward.1} parent=1 // pred_fallthru
      _
    // Predicated region
    $region70: #{actor_gcnn_forward.1} parent=1 // pred_check
      _
    $region71: #{actor_gcnn_forward.1} parent=1 // pred_check_branch
      %470 = sbr.rel (0) target = $region73
    $region72: #{actor_gcnn_forward.1} parent=1 // pred_region
      %472 = vsyncadd [#allocation5], 0
      %s474 = sshll.u32 [#allocation6], 4
      %s475 = int_to_ptr.vmem [resolvable:$true] %s474
      %s476 = sshll.u32 %s17, 4
      %s477 = int_to_ptr.hbm [resolvable:$true] %s476
      %479 = dma.vmem_to_hbm [thread:$0]  %s475, 32, %s477, [#allocation5]
    $region73: #{actor_gcnn_forward.1} parent=1 // pred_fallthru
      _
    // Predicated region
    $region74: #{actor_gcnn_forward.1} parent=1 // pred_check
      _
    $region75: #{actor_gcnn_forward.1} parent=1 // pred_check_branch
      %481 = sbr.rel (0) target = $region77
    $region76: #{actor_gcnn_forward.1} parent=1 // pred_region
      %483 = dma.done [#allocation3], 256
    $region77: #{actor_gcnn_forward.1} parent=1 // pred_fallthru
      _
    // Predicated region
    $region78: #{actor_gcnn_forward.1} parent=1 // pred_check
      _
    $region79: #{actor_gcnn_forward.1} parent=1 // pred_check_branch
      %485 = sbr.rel (0) target = $region81
    $region80: #{actor_gcnn_forward.1} parent=1 // pred_region
      %487 = dma.done [#allocation5], 32
    $region81: #{actor_gcnn_forward.1} parent=1 // pred_fallthru
      _
    // Predicated region
    $region82: #{actor_gcnn_forward.1} parent=1 // pred_check
      _
    $region83: #{actor_gcnn_forward.1} parent=1 // pred_check_branch
      %489 = sbr.rel (0) target = $region85
    $region84: #{actor_gcnn_forward.1} parent=1 // pred_region
      %491 = dma.done [#allocation5], 32
    $region85: #{actor_gcnn_forward.1} parent=1 // pred_fallthru
      _
    %492 = vsyncpa [#allocation3], 1
    %493 = vsyncpa [#allocation5], 1

</llo_original>
